<compile_context>
chip_gen: v7x
topology: tpu7x:2x2x1
jax: 0.10.0
libtpu: 0.0.40
codegen_flags: <defaults>
</compile_context>

<pallas_src>
import functools

import jax
import jax.numpy as jnp
from jax.experimental import pallas as pl
from jax.experimental.pallas import tpu as pltpu


# Max sublane-rows (of 128 lanes) per tile.  1024 is a multiple of every
# native packing (8/16/32) and keeps double-buffered in+out <= ~6 MiB for
# D=3 f32 -> fits the default scoped VMEM on v5e/v6e/v7x.
_MAX_TILE_ROWS = 1024


def _sublane_pack(dtype) -> int:
    """Native sublane packing: 8 for 4-byte, 16 for 2-byte, 32 for 1-byte."""
    return max(8, 32 // jnp.dtype(dtype).itemsize)


def _round_up(x: int, m: int) -> int:
    return -(-x // m) * m


def _choose_tile_rows(n_rows: int, batch: int, pack: int, max_tile_rows: int) -> int:
    """Pick the row-tile size (always a legal block: pack-multiple or full dim)."""
    max_tile_rows = max(pack, (max_tile_rows // pack) * pack)
    if n_rows > max_tile_rows:
        return max_tile_rows
    tr = n_rows                                    # full-dim block (always legal)
    if batch == 1 and n_rows >= 2 * pack:
        # Make sure the total grid has >= 2 steps so both v7x TensorCores get
        # work (costs one extra ~0.35us step on single-TC chips: negligible).
        tr = _round_up((n_rows + 1) // 2, pack)
    return tr


# --------------------------------------------------------------------------
# Kernels
# --------------------------------------------------------------------------
def _transform_dims_major_kernel(coef_ref, x_ref, o_ref, *, n_dims: int):
    """y[d] = sum_k M[d,k] * x[k] + t[d] on one dense (D, TR, 128) tile.

    coef_ref : SMEM, 1-D f32 (B*(D*D+D),); per batch: [M row-major | t]
    x_ref    : VMEM (1, D, TR, 128) input points (dims-major, native dtype)
    o_ref    : VMEM (1, D, TR, 128) transformed points (native dtype)
    """
    b = pl.program_id(0)
    stride = n_dims * (n_dims + 1)
    base = b * stride
    t_off = base + n_dims * n_dims

    # Re-read the input planes per output dim (instead of hoisting all D
    # planes): keeps only ~2 large f32 temporaries live, avoiding vreg/VMEM
    # spill pressure at TR=1024.  VMEM load slots have plenty of slack in this
    # HBM-bound kernel.
    for d in range(n_dims):
        acc = x_ref[0, 0].astype(jnp.float32) * coef_ref[base + d * n_dims]
        for k in range(1, n_dims):
            acc = acc + x_ref[0, k].astype(jnp.float32) * coef_ref[base + d * n_dims + k]
        acc = acc + coef_ref[t_off + d]                # translation
        o_ref[0, d] = acc.astype(o_ref.dtype)          # dense (TR,128) store


def _transform_2d_interleaved_kernel(coef_ref, x_ref, o_ref):
    """Transpose-free 2D path: (B, N, 2) processed as its free (B, 2N) view.

    Pairs (x, y) occupy adjacent lanes (128 is even, so a pair never crosses a
    lane-row or tile boundary).  The partner coordinate is fetched with two
    XLU lane rolls (free slot vs the VPU) plus a lane-parity select.

    coef layout per batch: [m00, m01, m10, m11, t0, t1]
      even lane (x_i): out = m00*x + m01*y + t0
      odd  lane (y_i): out = m10*x + m11*y + t1
    """
    b = pl.program_id(0)
    base = b * 6
    m00 = coef_ref[base + 0]
    m01 = coef_ref[base + 1]
    m10 = coef_ref[base + 2]
    m11 = coef_ref[base + 3]
    t0 = coef_ref[base + 4]
    t1 = coef_ref[base + 5]

    z = x_ref[0].astype(jnp.float32)                      # (TR, 128)
    lane = jax.lax.broadcasted_iota(jnp.int32, z.shape, 1)
    even = (lane & 1) == 0
    nxt = pltpu.roll(z, 127, 1)                           # z[.., j+1]  (shift -1 mod 128)
    prv = pltpu.roll(z, 1, 1)                             # z[.., j-1]
    partner = jnp.where(even, nxt, prv)
    c_self = jnp.where(even, m00, m11)
    c_other = jnp.where(even, m01, m10)
    t_pat = jnp.where(even, t0, t1)
    o_ref[0] = (z * c_self + partner * c_other + t_pat).astype(o_ref.dtype)


# --------------------------------------------------------------------------
# Coefficient precompute (plain JAX, tiny)
# --------------------------------------------------------------------------
def _build_coeffs(rotation_params, translation_params, scale_params, n_dims):
    """Flat f32 (B*(D*D+D),): per batch [M[0,:], ..., M[D-1,:], t[0..D-1]]."""
    B = scale_params.shape[0]
    rot = rotation_params.reshape(B, -1).astype(jnp.float32)
    trans = translation_params.reshape(B, -1).astype(jnp.float32)[:, :n_dims]
    # Only isotropic scale is honored (matches the PyTorch layer: [:, 0]).
    scale = scale_params.reshape(B, -1)[:, 0].astype(jnp.float32)

    if n_dims == 2:
        r = rot[:, 0]
        c, s = jnp.cos(r), jnp.sin(r)
        m = jnp.stack([scale * c, scale * s,
                       -scale * s, scale * c], axis=-1)              # (B, 4)
    elif n_dims == 3:
        yaw, pitch, roll = rot[:, 0], rot[:, 1], rot[:, 2]
        cy, sy = jnp.cos(yaw), jnp.sin(yaw)
        cp, sp = jnp.cos(pitch), jnp.sin(pitch)
        cr, sr = jnp.cos(roll), jnp.sin(roll)
        m = jnp.stack([
            scale * (cp * cr), scale * (cp * sr), scale * (-sp),
            scale * (sy * sp * cr - cy * sr),
            scale * (sy * sp * sr + cy * cr),
            scale * (sy * cp),
            scale * (cy * sp * cr + sy * sr),
            scale * (cy * sp * sr - sy * cr),
            scale * (cy * cp),
        ], axis=-1)                                                  # (B, 9)
    else:
        raise NotImplementedError(f"n_dims = {n_dims} not supported")

    coef = jnp.concatenate([m, trans], axis=-1)                      # (B, D*D+D)
    return coef.reshape(-1)


# --------------------------------------------------------------------------
# Entry points
# --------------------------------------------------------------------------
@functools.partial(jax.jit, static_argnames=("max_tile_rows",))
def homogeneous_transform_dims_major(x, rotation_params, translation_params,
                                     scale_params, *,
                                     max_tile_rows=_MAX_TILE_ROWS):
    """Transform a dims-major point cloud.

    x : (B, D, N) in its native dtype (no layout change, no dtype widening).
    returns (B, D, N), same dtype.
    """
    B, D, N = x.shape
    assert D in (2, 3), "Layer for other dimensionality specified"
    coef = _build_coeffs(rotation_params, translation_params, scale_params, D)

    itemsize = jnp.dtype(x.dtype).itemsize
    pack = _sublane_pack(x.dtype)
    n_rows = pl.cdiv(N, 128)
    if itemsize < 4:
        # Keep sub-32-bit blocks on the native (16/32, 128) packing.
        n_rows = _round_up(n_rows, pack)
    n_pad = n_rows * 128

    if n_pad != N:   # one extra copy only for ragged N; no padding to TR multiples
        x = jnp.pad(x, ((0, 0), (0, 0), (0, n_pad - N)))
    x4 = x.reshape(B, D, n_rows, 128)                 # free reshape

    tr = _choose_tile_rows(n_rows, B, pack, max_tile_rows)
    grid = (B, pl.cdiv(n_rows, tr))                   # partial last tile OK

    total = B * D * n_rows * 128
    cost = pl.CostEstimate(flops=2 * D * total, transcendentals=0,
                           bytes_accessed=2 * total * itemsize)

    kernel = functools.partial(_transform_dims_major_kernel, n_dims=D)
    out4 = pl.pallas_call(
        kernel,
        out_shape=jax.ShapeDtypeStruct((B, D, n_rows, 128), x.dtype),
        grid=grid,
        in_specs=[
            # tiny per-batch coefficients, flattened 1-D, whole array in SMEM
            pl.BlockSpec(memory_space=pltpu.MemorySpace.SMEM),
            # dense, double-buffered point tiles
            pl.BlockSpec((1, D, tr, 128), lambda b, t: (b, 0, t, 0)),
        ],
        out_specs=pl.BlockSpec((1, D, tr, 128), lambda b, t: (b, 0, t, 0)),
        compiler_params=pltpu.CompilerParams(
            dimension_semantics=("parallel", "parallel")),
        cost_estimate=cost,
    )(coef, x4)

    out = out4.reshape(B, D, n_pad)
    if n_pad != N:
        out = out[:, :, :N]
    return out


def _transform_2d_interleaved(shapes, rotation_params, translation_params,
                              scale_params):
    """PyTorch-convention 2D path with zero transposes: uses the free (B, 2N) view."""
    B, N, D = shapes.shape
    assert D == 2
    coef = _build_coeffs(rotation_params, translation_params, scale_params, 2)

    itemsize = jnp.dtype(shapes.dtype).itemsize
    pack = _sublane_pack(shapes.dtype)
    total = 2 * N
    n_rows = pl.cdiv(total, 128)
    if itemsize < 4:
        n_rows = _round_up(n_rows, pack)
    n_pad = n_rows * 128

    z = shapes.reshape(B, total)                      # free reshape, (x,y) interleaved
    if n_pad != total:
        z = jnp.pad(z, ((0, 0), (0, n_pad - total)))
    z3 = z.reshape(B, n_rows, 128)                    # free reshape

    tr = _choose_tile_rows(n_rows, B, pack, _MAX_TILE_ROWS)
    grid = (B, pl.cdiv(n_rows, tr))

    total_e = B * n_rows * 128
    cost = pl.CostEstimate(flops=6 * total_e, transcendentals=0,
                           bytes_accessed=2 * total_e * itemsize)

    out3 = pl.pallas_call(
        _transform_2d_interleaved_kernel,
        out_shape=jax.ShapeDtypeStruct((B, n_rows, 128), shapes.dtype),
        grid=grid,
        in_specs=[
            pl.BlockSpec(memory_space=pltpu.MemorySpace.SMEM),
            pl.BlockSpec((1, tr, 128), lambda b, t: (b, t, 0)),
        ],
        out_specs=pl.BlockSpec((1, tr, 128), lambda b, t: (b, t, 0)),
        compiler_params=pltpu.CompilerParams(
            dimension_semantics=("parallel", "parallel")),
        cost_estimate=cost,
    )(coef, z3)

    out = out3.reshape(B, n_pad)
    if n_pad != total:
        out = out[:, :total]
    return out.reshape(B, N, 2)


@jax.jit
def homogeneous_transform(shapes, rotation_params, translation_params,
                          scale_params):
    """Pallas equivalent of _HomogeneousTransformationLayer.forward.

    shapes             : (B, N, n_dims)   (PyTorch convention)
    rotation_params    : (B, n_rot, 1)    (n_rot = 1 for 2D, 3 for 3D)
    translation_params : (B, n_dims, 1)
    scale_params       : (B, >=1, 1)      (isotropic; only [:, 0] is used)
    returns            : (B, N, n_dims), same dtype as `shapes`.
    """
    B, N, D = shapes.shape
    assert D in (2, 3), "Layer for other dimensionality specified"

    if D == 2:
        # Transpose-free path: process the free row-major (B, 2N) view.
        return _transform_2d_interleaved(shapes, rotation_params,
                                         translation_params, scale_params)

    # D == 3: single native-dtype layout change each way.
    # TODO(synk): keep point clouds dims-major (B, D, N) end-to-end and call
    # homogeneous_transform_dims_major directly to remove these transposes.
    x = jnp.swapaxes(shapes, 1, 2)                       # (B, D, N)
    out = homogeneous_transform_dims_major(
        x, rotation_params, translation_params, scale_params)
    return jnp.swapaxes(out, 1, 2)                       # (B, N, D)


# -------------------- pure-JAX reference (for verification) --------------------
def _reference(shapes, rotation_params, translation_params, scale_params):
    B, N, D = shapes.shape
    rot = rotation_params.reshape(B, -1)
    trans = translation_params.reshape(B, -1)
    scale = scale_params.reshape(B, -1)[:, 0]

    M = jnp.zeros((B, D + 1, D + 1), dtype=jnp.float32)
    M = M.at[:, -1, -1].set(1.0)
    if D == 2:
        r = rot[:, 0]
        M = M.at[:, 0, 0].set(scale * jnp.cos(r))
        M = M.at[:, 0, 1].set(scale * jnp.sin(r))
        M = M.at[:, 1, 0].set(-scale * jnp.sin(r))
        M = M.at[:, 1, 1].set(scale * jnp.cos(r))
    else:
        yaw, pitch, roll = rot[:, 0], rot[:, 1], rot[:, 2]
        cy, sy = jnp.cos(yaw), jnp.sin(yaw)
        cp, sp = jnp.cos(pitch), jnp.sin(pitch)
        cr, sr = jnp.cos(roll), jnp.sin(roll)
        M = M.at[:, 0, 0].set(scale * (cp * cr))
        M = M.at[:, 0, 1].set(scale * (cp * sr))
        M = M.at[:, 0, 2].set(scale * (-sp))
        M = M.at[:, 1, 0].set(scale * (sy * sp * cr - cy * sr))
        M = M.at[:, 1, 1].set(scale * (sy * sp * sr + cy * cr))
        M = M.at[:, 1, 2].set(scale * (sy * cp))
        M = M.at[:, 2, 0].set(scale * (cy * sp * cr + sy * sr))
        M = M.at[:, 2, 1].set(scale * (cy * sp * sr - sy * cr))
        M = M.at[:, 2, 2].set(scale * (cy * cp))
    M = M.at[:, :-1, -1].set(trans)

    homog = jnp.concatenate(
        [shapes.astype(jnp.float32), jnp.ones((B, N, 1), jnp.float32)], axis=-1)
    out = jnp.einsum("bnk,bjk->bnj", homog, M)
    return out[..., :-1]


if __name__ == "__main__":
    keys = jax.random.split(jax.random.PRNGKey(0), 12)

    # ---- 3D f32, PyTorch-convention entry (ragged N -> pad-to-128 path) ----
    B, N, D = 2, 300, 3
    shapes = jax.random.normal(keys[0], (B, N, D), dtype=jnp.float32)
    rotation_params = jax.random.normal(keys[1], (B, 3, 1), dtype=jnp.float32)
    translation_params = jax.random.normal(keys[2], (B, D, 1), dtype=jnp.float32)
    scale_params = jax.random.uniform(keys[3], (B, 1, 1), dtype=jnp.float32,
                                      minval=0.5, maxval=1.5)
    out = jax.block_until_ready(
        homogeneous_transform(shapes, rotation_params, translation_params,
                              scale_params))
    ref = _reference(shapes, rotation_params, translation_params, scale_params)
    assert out.shape == (B, N, D) and out.dtype == shapes.dtype
    assert jnp.allclose(out, ref, atol=1e-5, rtol=1e-5), "3D f32 mismatch"

    # ---- 2D f32, transpose-free interleaved path (ragged N) ----
    B2, N2 = 2, 200
    shapes2 = jax.random.normal(keys[4], (B2, N2, 2), dtype=jnp.float32)
    rot2 = jax.random.normal(keys[5], (B2, 1, 1), dtype=jnp.float32)
    trans2 = jax.random.normal(keys[6], (B2, 2, 1), dtype=jnp.float32)
    scale2 = jax.random.uniform(keys[7], (B2, 1, 1), dtype=jnp.float32,
                                minval=0.5, maxval=1.5)
    out2 = jax.block_until_ready(
        homogeneous_transform(shapes2, rot2, trans2, scale2))
    ref2 = _reference(shapes2, rot2, trans2, scale2)
    assert out2.shape == (B2, N2, 2) and out2.dtype == shapes2.dtype
    assert jnp.allclose(out2, ref2, atol=1e-5, rtol=1e-5), "2D f32 mismatch"

    # ---- dims-major entry, B=1: exercises the megacore row-split and the
    # ---- partial last row tile (n_rows=20, tr=16 -> tiles of 16 + 4) ----
    B3, N3 = 1, 2560
    x3 = jax.random.normal(keys[8], (B3, 3, N3), dtype=jnp.float32)
    rot3 = jax.random.normal(keys[9], (B3, 3, 1), dtype=jnp.float32)
    trans3 = jax.random.normal(keys[10], (B3, 3, 1), dtype=jnp.float32)
    scale3 = jax.random.uniform(keys[11], (B3, 1, 1), dtype=jnp.float32,
                                minval=0.5, maxval=1.5)
    out3 = jax.block_until_ready(
        homogeneous_transform_dims_major(x3, rot3, trans3, scale3))
    ref3 = jnp.swapaxes(
        _reference(jnp.swapaxes(x3, 1, 2), rot3, trans3, scale3), 1, 2)
    assert out3.shape == (B3, 3, N3)
    assert jnp.allclose(out3, ref3, atol=1e-5, rtol=1e-5), "dims-major mismatch"

    # ---- bf16 3D (exercises native 16-sublane packing + native-dtype transit) ----
    shapes4 = shapes.astype(jnp.bfloat16)
    out4 = jax.block_until_ready(
        homogeneous_transform(shapes4, rotation_params, translation_params,
                              scale_params))
    ref4 = _reference(shapes4.astype(jnp.float32), rotation_params,
                      translation_params, scale_params)
    assert out4.dtype == jnp.bfloat16
    assert jnp.allclose(out4.astype(jnp.float32), ref4, atol=6e-2, rtol=6e-2), \
        "bf16 mismatch"

    print("KERNEL_OK")
</pallas_src>

<mosaic_0001>
module attributes {stable_mosaic.version = 11 : i64} {
  func.func @_transform_dims_major_kernel(%arg0: i32, %arg1: i32, %arg2: memref<24xf32, #tpu.memory_space<smem>>, %arg3: memref<1x3x3x128xf32, #tpu.memory_space<vmem>>, %arg4: memref<1x3x3x128xf32, #tpu.memory_space<vmem>>) attributes {dimension_semantics = [#tpu.dimension_semantics<parallel>, #tpu.dimension_semantics<parallel>], iteration_bounds = array<i64: 2, 1>, scalar_prefetch = 0 : i64, scratch_operands = 0 : i64, tpu.core_type = #tpu.core_type<tc>, window_params = [{transform_indices = @transform_0, window_bounds = array<i64: 24>}, {transform_indices = @transform_1, window_bounds = array<i64: 1, 3, 3, 128>}, {transform_indices = @transform_2, window_bounds = array<i64: 1, 3, 3, 128>}]} {
    %c12_i32 = arith.constant 12 : i32
    %0 = arith.muli %arg0, %c12_i32 : i32
    %c9_i32 = arith.constant 9 : i32
    %1 = arith.addi %0, %c9_i32 : i32
    %c0 = arith.constant 0 : index
    %c0_0 = arith.constant 0 : index
    %c0_1 = arith.constant 0 : index
    %c0_2 = arith.constant 0 : index
    %2 = vector.load %arg3[%c0, %c0_0, %c0_1, %c0_2] : memref<1x3x3x128xf32, #tpu.memory_space<vmem>>, vector<1x1x3x128xf32>
    %3 = vector.shape_cast %2 : vector<1x1x3x128xf32> to vector<3x128xf32>
    %c0_i32 = arith.constant 0 : i32
    %4 = arith.addi %0, %c0_i32 : i32
    %5 = arith.index_cast %4 : i32 to index
    %6 = memref.load %arg2[%5] : memref<24xf32, #tpu.memory_space<smem>>
    %7 = vector.broadcast %6 : f32 to vector<3x128xf32>
    %8 = arith.mulf %3, %7 : vector<3x128xf32>
    %c0_3 = arith.constant 0 : index
    %c1 = arith.constant 1 : index
    %c0_4 = arith.constant 0 : index
    %c0_5 = arith.constant 0 : index
    %9 = vector.load %arg3[%c0_3, %c1, %c0_4, %c0_5] : memref<1x3x3x128xf32, #tpu.memory_space<vmem>>, vector<1x1x3x128xf32>
    %10 = vector.shape_cast %9 : vector<1x1x3x128xf32> to vector<3x128xf32>
    %c0_i32_6 = arith.constant 0 : i32
    %11 = arith.addi %0, %c0_i32_6 : i32
    %c1_i32 = arith.constant 1 : i32
    %12 = arith.addi %11, %c1_i32 : i32
    %13 = arith.index_cast %12 : i32 to index
    %14 = memref.load %arg2[%13] : memref<24xf32, #tpu.memory_space<smem>>
    %15 = vector.broadcast %14 : f32 to vector<3x128xf32>
    %16 = arith.mulf %10, %15 : vector<3x128xf32>
    %17 = arith.addf %8, %16 : vector<3x128xf32>
    %c0_7 = arith.constant 0 : index
    %c2 = arith.constant 2 : index
    %c0_8 = arith.constant 0 : index
    %c0_9 = arith.constant 0 : index
    %18 = vector.load %arg3[%c0_7, %c2, %c0_8, %c0_9] : memref<1x3x3x128xf32, #tpu.memory_space<vmem>>, vector<1x1x3x128xf32>
    %19 = vector.shape_cast %18 : vector<1x1x3x128xf32> to vector<3x128xf32>
    %c0_i32_10 = arith.constant 0 : i32
    %20 = arith.addi %0, %c0_i32_10 : i32
    %c2_i32 = arith.constant 2 : i32
    %21 = arith.addi %20, %c2_i32 : i32
    %22 = arith.index_cast %21 : i32 to index
    %23 = memref.load %arg2[%22] : memref<24xf32, #tpu.memory_space<smem>>
    %24 = vector.broadcast %23 : f32 to vector<3x128xf32>
    %25 = arith.mulf %19, %24 : vector<3x128xf32>
    %26 = arith.addf %17, %25 : vector<3x128xf32>
    %c0_i32_11 = arith.constant 0 : i32
    %27 = arith.addi %1, %c0_i32_11 : i32
    %28 = arith.index_cast %27 : i32 to index
    %29 = memref.load %arg2[%28] : memref<24xf32, #tpu.memory_space<smem>>
    %30 = vector.broadcast %29 : f32 to vector<3x128xf32>
    %31 = arith.addf %26, %30 : vector<3x128xf32>
    %c0_12 = arith.constant 0 : index
    %c0_13 = arith.constant 0 : index
    %c0_14 = arith.constant 0 : index
    %c0_15 = arith.constant 0 : index
    %32 = vector.load %arg4[%c0_12, %c0_13, %c0_14, %c0_15] : memref<1x3x3x128xf32, #tpu.memory_space<vmem>>, vector<1x1x3x128xf32>
    %33 = vector.shape_cast %32 : vector<1x1x3x128xf32> to vector<3x128xf32>
    %34 = vector.shape_cast %31 : vector<3x128xf32> to vector<1x1x3x128xf32>
    tpu.vector_store %arg4[%c0_12, %c0_13, %c0_14, %c0_15], %34 {strides = array<i32>} : memref<1x3x3x128xf32, #tpu.memory_space<vmem>>, vector<1x1x3x128xf32>,
    %c0_16 = arith.constant 0 : index
    %c0_17 = arith.constant 0 : index
    %c0_18 = arith.constant 0 : index
    %c0_19 = arith.constant 0 : index
    %35 = vector.load %arg3[%c0_16, %c0_17, %c0_18, %c0_19] : memref<1x3x3x128xf32, #tpu.memory_space<vmem>>, vector<1x1x3x128xf32>
    %36 = vector.shape_cast %35 : vector<1x1x3x128xf32> to vector<3x128xf32>
    %c3_i32 = arith.constant 3 : i32
    %37 = arith.addi %0, %c3_i32 : i32
    %38 = arith.index_cast %37 : i32 to index
    %39 = memref.load %arg2[%38] : memref<24xf32, #tpu.memory_space<smem>>
    %40 = vector.broadcast %39 : f32 to vector<3x128xf32>
    %41 = arith.mulf %36, %40 : vector<3x128xf32>
    %c0_20 = arith.constant 0 : index
    %c1_21 = arith.constant 1 : index
    %c0_22 = arith.constant 0 : index
    %c0_23 = arith.constant 0 : index
    %42 = vector.load %arg3[%c0_20, %c1_21, %c0_22, %c0_23] : memref<1x3x3x128xf32, #tpu.memory_space<vmem>>, vector<1x1x3x128xf32>
    %43 = vector.shape_cast %42 : vector<1x1x3x128xf32> to vector<3x128xf32>
    %c3_i32_24 = arith.constant 3 : i32
    %44 = arith.addi %0, %c3_i32_24 : i32
    %c1_i32_25 = arith.constant 1 : i32
    %45 = arith.addi %44, %c1_i32_25 : i32
    %46 = arith.index_cast %45 : i32 to index
    %47 = memref.load %arg2[%46] : memref<24xf32, #tpu.memory_space<smem>>
    %48 = vector.broadcast %47 : f32 to vector<3x128xf32>
    %49 = arith.mulf %43, %48 : vector<3x128xf32>
    %50 = arith.addf %41, %49 : vector<3x128xf32>
    %c0_26 = arith.constant 0 : index
    %c2_27 = arith.constant 2 : index
    %c0_28 = arith.constant 0 : index
    %c0_29 = arith.constant 0 : index
    %51 = vector.load %arg3[%c0_26, %c2_27, %c0_28, %c0_29] : memref<1x3x3x128xf32, #tpu.memory_space<vmem>>, vector<1x1x3x128xf32>
    %52 = vector.shape_cast %51 : vector<1x1x3x128xf32> to vector<3x128xf32>
    %c3_i32_30 = arith.constant 3 : i32
    %53 = arith.addi %0, %c3_i32_30 : i32
    %c2_i32_31 = arith.constant 2 : i32
    %54 = arith.addi %53, %c2_i32_31 : i32
    %55 = arith.index_cast %54 : i32 to index
    %56 = memref.load %arg2[%55] : memref<24xf32, #tpu.memory_space<smem>>
    %57 = vector.broadcast %56 : f32 to vector<3x128xf32>
    %58 = arith.mulf %52, %57 : vector<3x128xf32>
    %59 = arith.addf %50, %58 : vector<3x128xf32>
    %c1_i32_32 = arith.constant 1 : i32
    %60 = arith.addi %1, %c1_i32_32 : i32
    %61 = arith.index_cast %60 : i32 to index
    %62 = memref.load %arg2[%61] : memref<24xf32, #tpu.memory_space<smem>>
    %63 = vector.broadcast %62 : f32 to vector<3x128xf32>
    %64 = arith.addf %59, %63 : vector<3x128xf32>
    %c0_33 = arith.constant 0 : index
    %c1_34 = arith.constant 1 : index
    %c0_35 = arith.constant 0 : index
    %c0_36 = arith.constant 0 : index
    %65 = vector.load %arg4[%c0_33, %c1_34, %c0_35, %c0_36] : memref<1x3x3x128xf32, #tpu.memory_space<vmem>>, vector<1x1x3x128xf32>
    %66 = vector.shape_cast %65 : vector<1x1x3x128xf32> to vector<3x128xf32>
    %67 = vector.shape_cast %64 : vector<3x128xf32> to vector<1x1x3x128xf32>
    tpu.vector_store %arg4[%c0_33, %c1_34, %c0_35, %c0_36], %67 {strides = array<i32>} : memref<1x3x3x128xf32, #tpu.memory_space<vmem>>, vector<1x1x3x128xf32>,
    %c0_37 = arith.constant 0 : index
    %c0_38 = arith.constant 0 : index
    %c0_39 = arith.constant 0 : index
    %c0_40 = arith.constant 0 : index
    %68 = vector.load %arg3[%c0_37, %c0_38, %c0_39, %c0_40] : memref<1x3x3x128xf32, #tpu.memory_space<vmem>>, vector<1x1x3x128xf32>
    %69 = vector.shape_cast %68 : vector<1x1x3x128xf32> to vector<3x128xf32>
    %c6_i32 = arith.constant 6 : i32
    %70 = arith.addi %0, %c6_i32 : i32
    %71 = arith.index_cast %70 : i32 to index
    %72 = memref.load %arg2[%71] : memref<24xf32, #tpu.memory_space<smem>>
    %73 = vector.broadcast %72 : f32 to vector<3x128xf32>
    %74 = arith.mulf %69, %73 : vector<3x128xf32>
    %c0_41 = arith.constant 0 : index
    %c1_42 = arith.constant 1 : index
    %c0_43 = arith.constant 0 : index
    %c0_44 = arith.constant 0 : index
    %75 = vector.load %arg3[%c0_41, %c1_42, %c0_43, %c0_44] : memref<1x3x3x128xf32, #tpu.memory_space<vmem>>, vector<1x1x3x128xf32>
    %76 = vector.shape_cast %75 : vector<1x1x3x128xf32> to vector<3x128xf32>
    %c6_i32_45 = arith.constant 6 : i32
    %77 = arith.addi %0, %c6_i32_45 : i32
    %c1_i32_46 = arith.constant 1 : i32
    %78 = arith.addi %77, %c1_i32_46 : i32
    %79 = arith.index_cast %78 : i32 to index
    %80 = memref.load %arg2[%79] : memref<24xf32, #tpu.memory_space<smem>>
    %81 = vector.broadcast %80 : f32 to vector<3x128xf32>
    %82 = arith.mulf %76, %81 : vector<3x128xf32>
    %83 = arith.addf %74, %82 : vector<3x128xf32>
    %c0_47 = arith.constant 0 : index
    %c2_48 = arith.constant 2 : index
    %c0_49 = arith.constant 0 : index
    %c0_50 = arith.constant 0 : index
    %84 = vector.load %arg3[%c0_47, %c2_48, %c0_49, %c0_50] : memref<1x3x3x128xf32, #tpu.memory_space<vmem>>, vector<1x1x3x128xf32>
    %85 = vector.shape_cast %84 : vector<1x1x3x128xf32> to vector<3x128xf32>
    %c6_i32_51 = arith.constant 6 : i32
    %86 = arith.addi %0, %c6_i32_51 : i32
    %c2_i32_52 = arith.constant 2 : i32
    %87 = arith.addi %86, %c2_i32_52 : i32
    %88 = arith.index_cast %87 : i32 to index
    %89 = memref.load %arg2[%88] : memref<24xf32, #tpu.memory_space<smem>>
    %90 = vector.broadcast %89 : f32 to vector<3x128xf32>
    %91 = arith.mulf %85, %90 : vector<3x128xf32>
    %92 = arith.addf %83, %91 : vector<3x128xf32>
    %c2_i32_53 = arith.constant 2 : i32
    %93 = arith.addi %1, %c2_i32_53 : i32
    %94 = arith.index_cast %93 : i32 to index
    %95 = memref.load %arg2[%94] : memref<24xf32, #tpu.memory_space<smem>>
    %96 = vector.broadcast %95 : f32 to vector<3x128xf32>
    %97 = arith.addf %92, %96 : vector<3x128xf32>
    %c0_54 = arith.constant 0 : index
    %c2_55 = arith.constant 2 : index
    %c0_56 = arith.constant 0 : index
    %c0_57 = arith.constant 0 : index
    %98 = vector.load %arg4[%c0_54, %c2_55, %c0_56, %c0_57] : memref<1x3x3x128xf32, #tpu.memory_space<vmem>>, vector<1x1x3x128xf32>
    %99 = vector.shape_cast %98 : vector<1x1x3x128xf32> to vector<3x128xf32>
    %100 = vector.shape_cast %97 : vector<3x128xf32> to vector<1x1x3x128xf32>
    tpu.vector_store %arg4[%c0_54, %c2_55, %c0_56, %c0_57], %100 {strides = array<i32>} : memref<1x3x3x128xf32, #tpu.memory_space<vmem>>, vector<1x1x3x128xf32>,
    return
  }
  func.func @transform_0(%arg0: i32, %arg1: i32) -> i32 {
    %c0_i32 = arith.constant 0 : i32
    %c0_i32_0 = arith.constant 0 : i32
    return %c0_i32 : i32
  }
  func.func @transform_1(%arg0: i32, %arg1: i32) -> (i32, i32, i32, i32) {
    %c0_i32 = arith.constant 0 : i32
    %c0_i32_0 = arith.constant 0 : i32
    %c0_i32_1 = arith.constant 0 : i32
    return %arg0, %c0_i32, %arg1, %c0_i32_0 : i32, i32, i32, i32
  }
  func.func @transform_2(%arg0: i32, %arg1: i32) -> (i32, i32, i32, i32) {
    %c0_i32 = arith.constant 0 : i32
    %c0_i32_0 = arith.constant 0 : i32
    %c0_i32_1 = arith.constant 0 : i32
    return %arg0, %c0_i32, %arg1, %c0_i32_0 : i32, i32, i32, i32
  }
}

</mosaic_0001>

<llo_original>
// kernel: homogeneous_transform_dims_major.1
$region0: #{homogeneous_transform_dims_major.1}
  #allocation0 [shape = 'u32[]', space=smem, size = 0x4, offset = 0x4, fixed_abs, tag = 'smem constant byte address 0x4 - core index']
  #allocation1 [shape = 'u32[144,128]{1,0:T(1,128)}', space=vmem, size = 0x12000, scoped, tag = 'internal scratch']
  %s0 = inlined_call_operand.vmem [shape: f32[24], index: 0, kind: input, shape index: {}]
  %s1 = inlined_call_operand.vmem [shape: f32[2,3,3,128], index: 1, kind: input, shape index: {}]
  %s2 = inlined_call_operand.vmem [shape: f32[2,3,3,128], index: 2, kind: output, shape index: {}]
  %s3 = sld [smem:[#allocation0]]
  $region45: #{homogeneous_transform_dims_major.1} parent=0
    _
  %s5 = ssub.s32 1, %s3
  %s6 = scalar_select 0, %s5, %s3
  $region1: #{homogeneous_transform_dims_major.1} parent=0
    #allocation2 [shape = 'u8[512]{0}', space=smem, size = 0x200, scoped, tag = 'input window, operand 0, single buffered']
    #allocation3 [shape = 's32[2]{0}', space=sflag, size = 0x8, scoped, tag = 'scoped memory for homogeneous_transform_dims_major.1']
    %7 = vsyncpa [#allocation3], 0
    loop: start=0, step=1, limit=4
    $region2: #{homogeneous_transform_dims_major.1} parent=1 // loop_pre_header
      _
    $region3: #{homogeneous_transform_dims_major.1} parent=1 // loop_header
      %s9 = sphi 0, %s13
      %p10 = scmp.ge.s32.totalorder %s9, 4
      %s16 = sphi 0, %s28
      %s17 = sphi 0, %s24
      %s18 = sphi 0, %s16
      %s19 = sphi 0, %s17
      %s20 = sphi 0, %s18
      %s21 = sphi 0, %s19
      %s29 = sphi 0, %s29
      %s31 = sphi 0, %s29
      %s32 = sphi 0, %s31
      %s46 = sphi 0, %s32
      %s54 = sphi 0, %s56
      %s57 = sphi 0, %s54
      %s58 = sphi 0, %s57
      %s74 = sphi 0, %s58
      %s82 = sphi 0, %s84
      %s85 = sphi 0, %s82
      %s86 = sphi 0, %s85
      %s102 = sphi 0, %s86
    $region4: #{homogeneous_transform_dims_major.1} parent=1 // loop_header_branch
      %12 = sbr.rel (%p10) target = $region8
    $region5: #{homogeneous_transform_dims_major.1} parent=1 // loop_body
      %s14 = ssub.s32 %s9, 1
      %s15 = ssub.s32 %s9, 2
      %s22 = sadd.s32 1, %s17
      %p23 = scmp.ge.s32.totalorder %s22, 1
      %s24 = scalar_select %p23, 0, %s22
      %s25 = sadd.s32 1, %s16
      %s26 = scalar_select %p23, %s25, %s16
      %p27 = scmp.ge.s32.totalorder %s26, 2
      %s28 = scalar_select %p27, 0, %s26
      %s30 = sadd.s32 %s29, 1
      %p33 = scmp.eq.s32.totalorder %s9, 1
      %p34 = scmp.ne.s32.totalorder %s29, %s31
      %p35 = scmp.eq.s32.totalorder %s9, 0
      %p36 = por %p34, %p35
      %p37 = scmp.ne.s32.totalorder %s29, %s31
      %p38 = scmp.eq.s32.totalorder %s14, 1
      %p39 = por %p37, %p38
      %p40 = scmp.ne.s32.totalorder %s31, %s32
      %p41 = scmp.eq.s32.totalorder %s14, 0
      %p42 = por %p40, %p41
      %p43 = scmp.ne.s32.totalorder %s31, %s32
      %p44 = scmp.eq.s32.totalorder %s15, 1
      %p45 = por %p43, %p44
      %p47 = scmp.ne.s32.totalorder %s32, %s46
      %p48 = scmp.eq.s32.totalorder %s15, 0
      %p49 = por %p47, %p48
      %s50 = ssub.s32 %s16, %s28
      %s51 = ssub.s32 %s17, %s24
      %s52 = sor.u32 %s50, %s51
      %p53 = scmp.eq.s32.totalorder %s52, 0
      %s55 = sadd.s32 %s54, 1
      %s56 = scalar_select %p53, %s54, %s55
      %p59 = pneg %p53
      %p60 = scmp.eq.s32.totalorder %s9, 1
      %p61 = por %p59, %p60
      %p62 = scmp.ne.s32.totalorder %s54, %s57
      %p63 = scmp.eq.s32.totalorder %s9, 0
      %p64 = por %p62, %p63
      %p65 = scmp.ne.s32.totalorder %s54, %s57
      %p66 = scmp.eq.s32.totalorder %s14, 1
      %p67 = por %p65, %p66
      %p68 = scmp.ne.s32.totalorder %s57, %s58
      %p69 = scmp.eq.s32.totalorder %s14, 0
      %p70 = por %p68, %p69
      %p71 = scmp.ne.s32.totalorder %s57, %s58
      %p72 = scmp.eq.s32.totalorder %s15, 1
      %p73 = por %p71, %p72
      %p75 = scmp.ne.s32.totalorder %s58, %s74
      %p76 = scmp.eq.s32.totalorder %s15, 0
      %p77 = por %p75, %p76
      %s78 = ssub.s32 %s16, %s28
      %s79 = ssub.s32 %s17, %s24
      %s80 = sor.u32 %s78, %s79
      %p81 = scmp.eq.s32.totalorder %s80, 0
      %s83 = sadd.s32 %s82, 1
      %s84 = scalar_select %p81, %s82, %s83
      %p87 = pneg %p81
      %p88 = scmp.eq.s32.totalorder %s9, 1
      %p89 = por %p87, %p88
      %p90 = scmp.ne.s32.totalorder %s82, %s85
      %p91 = scmp.eq.s32.totalorder %s9, 0
      %p92 = por %p90, %p91
      %p93 = scmp.ne.s32.totalorder %s82, %s85
      %p94 = scmp.eq.s32.totalorder %s14, 1
      %p95 = por %p93, %p94
      %p96 = scmp.ne.s32.totalorder %s85, %s86
      %p97 = scmp.eq.s32.totalorder %s14, 0
      %p98 = por %p96, %p97
      %p99 = scmp.ne.s32.totalorder %s85, %s86
      %p100 = scmp.eq.s32.totalorder %s15, 1
      %p101 = por %p99, %p100
      %p103 = scmp.ne.s32.totalorder %s86, %s102
      %p104 = scmp.eq.s32.totalorder %s15, 0
      %p105 = por %p103, %p104
      %p106 = scmp.le.s32.totalorder 1, %s9
      %p107 = scmp.lt.s32.totalorder %s9, 3
      %p108 = pnand %p106, %p107
      %p109 = pneg %p108
      // Predicated region
      $region9: #{homogeneous_transform_dims_major.1} parent=5 // pred_check
        _
      $region10: #{homogeneous_transform_dims_major.1} parent=5 // pred_check_branch
        %111 = sbr.rel (%p108) target = $region12
      $region11: #{homogeneous_transform_dims_major.1} parent=5 // pred_region
        %s112 = ssub.s32 %s9, 1
        // Predicated region
        $region13: #{homogeneous_transform_dims_major.1} parent=11 // pred_check
          %p113 = pneg %p42
        $region14: #{homogeneous_transform_dims_major.1} parent=11 // pred_check_branch
          %115 = sbr.rel (%p113) target = $region16
        $region15: #{homogeneous_transform_dims_major.1} parent=11 // pred_region
          %s117 = ssub.s32 16, 16
          %118 = vsyncadd [#allocation3], %s117
          %s120 = sshll.u32 %s0, 4
          %s121 = int_to_ptr.vmem [resolvable:$true] %s120
          %123 = dma.vmem_to_smem %s121, 16, [#allocation2], [#allocation3]
        $region16: #{homogeneous_transform_dims_major.1} parent=11 // pred_fallthru
          _
      $region12: #{homogeneous_transform_dims_major.1} parent=5 // pred_fallthru
        _
      %p124 = scmp.lt.s32.totalorder %s9, 2
      // Predicated region
      $region17: #{homogeneous_transform_dims_major.1} parent=5 // pred_check
        %p125 = pneg %p124
      $region18: #{homogeneous_transform_dims_major.1} parent=5 // pred_check_branch
        %127 = sbr.rel (%p125) target = $region20
      $region19: #{homogeneous_transform_dims_major.1} parent=5 // pred_region
        // Predicated region
        $region21: #{homogeneous_transform_dims_major.1} parent=19 // pred_check
          %p128 = pneg %p64
        $region22: #{homogeneous_transform_dims_major.1} parent=19 // pred_check_branch
          %130 = sbr.rel (%p128) target = $region24
        $region23: #{homogeneous_transform_dims_major.1} parent=19 // pred_region
          %p131 = scmp.lt.s32.totalorder %s16, 1
          %s132 = scalar_select %p131, %s16, 1
          %p133 = scmp.lt.s32.totalorder %s17, 0
          %s134 = scalar_select %p133, %s17, 0
          %s135 = smul.addr %s132, 3
          %s136 = sadd.s32 %s134, %s135
          %s137 = smul.addr %s136, 4
          %s138 = scalar_lea.vmem %s1, %s137
        $region24: #{homogeneous_transform_dims_major.1} parent=19 // pred_fallthru
          _
      $region20: #{homogeneous_transform_dims_major.1} parent=5 // pred_fallthru
        _
      %p139 = scmp.le.s32.totalorder 1, %s9
      %p140 = scmp.lt.s32.totalorder %s9, 3
      %p141 = pnand %p139, %p140
      %p142 = pneg %p141
      // Predicated region
      $region25: #{homogeneous_transform_dims_major.1} parent=5 // pred_check
        _
      $region26: #{homogeneous_transform_dims_major.1} parent=5 // pred_check_branch
        %144 = sbr.rel (%p141) target = $region28
      $region27: #{homogeneous_transform_dims_major.1} parent=5 // pred_region
        %s145 = ssub.s32 %s9, 1
        // Predicated region
        $region29: #{homogeneous_transform_dims_major.1} parent=27 // pred_check
          %p146 = pneg %p42
        $region30: #{homogeneous_transform_dims_major.1} parent=27 // pred_check_branch
          %148 = sbr.rel (%p146) target = $region32
        $region31: #{homogeneous_transform_dims_major.1} parent=27 // pred_region
          %149 = dma.done [#allocation3], 16
        $region32: #{homogeneous_transform_dims_major.1} parent=27 // pred_fallthru
          _
        %150 = sfence
        %p151 = pneg %p42
        %p152 = pneg %p39
        %p153 = scmp.lt.s32.totalorder %s18, 1
        %s154 = scalar_select %p153, %s18, 1
        %p155 = scmp.lt.s32.totalorder %s19, 0
        %s156 = scalar_select %p155, %s19, 0
        %s157 = smul.addr %s154, 3
        %s158 = sadd.s32 %s156, %s157
        %s159 = smul.addr %s158, 4
        %s160 = scalar_lea.vmem %s1, %s159
        %p161 = pneg %p70
        %p162 = pneg %p67
        %p163 = pneg %p98
        %p164 = pneg %p95
        %p165 = scmp.lt.s32.totalorder %s18, 1
        %s166 = scalar_select %p165, %s18, 1
        %p167 = scmp.lt.s32.totalorder %s19, 0
        %s168 = scalar_select %p167, %s19, 0
        %s169 = smul.addr %s166, 3
        %s170 = sadd.s32 %s168, %s169
        %s171 = smul.addr %s170, 4
        %s172 = scalar_lea.vmem %s2, %s171
        %p173 = scmp.lt.s32.totalorder %s18, 1
        %s174 = scalar_select %p173, %s18, 1
        %p175 = scmp.lt.s32.totalorder %s19, 0
        %s176 = scalar_select %p175, %s19, 0
        %s177 = smul.addr %s174, 3
        %s178 = sadd.s32 %s176, %s177
        %s179 = smul.addr %s178, 4
        %s180 = scalar_lea.vmem %s1, %s179
        %p181 = scmp.lt.s32.totalorder %s18, 1
        %s182 = scalar_select %p181, %s18, 1
        %p183 = scmp.lt.s32.totalorder %s19, 0
        %s184 = scalar_select %p183, %s19, 0
        %s185 = smul.addr %s182, 3
        %s186 = sadd.s32 %s184, %s185
        %s187 = smul.addr %s186, 4
        %s188 = scalar_lea.vmem %s2, %s187
        %s189 = smul.u32 %s18, 12
        %s190 = sadd.s32 %s189, 9
        %v191 = vld [vmem:[%s180] sm:$0x7]
        %s192 = sld [smem:[#allocation2 + %s189]]
        %v193 = vstv %s192
        %v194 = vmul.f32 %v191, %v193
        %s195 = scalar_lea.vmem %s180, 4
        %v196 = vld [vmem:[%s195] sm:$0x7]
        %s197 = sadd.s32 %s189, 1
        %s198 = sld [smem:[#allocation2 + %s197]]
        %v199 = vstv %s198
        %v200 = vmul.f32 %v196, %v199
        %v201 = vadd.f32 %v194, %v200
        %s202 = scalar_lea.vmem %s180, 8
        %v203 = vld [vmem:[%s202] sm:$0x7]
        %s204 = sadd.s32 %s189, 2
        %s205 = sld [smem:[#allocation2 + %s204]]
        %v206 = vstv %s205
        %v207 = vmul.f32 %v203, %v206
        %v208 = vadd.f32 %v201, %v207
        %s209 = sld [smem:[#allocation2 + %s190]]
        %v210 = vstv %s209
        %v211 = vadd.f32 %v208, %v210
        %212 = vst [vmem:[%s188] sm:$0x7] %v211
        %v213 = vld [vmem:[%s180] sm:$0x7]
        %s214 = sadd.s32 %s189, 3
        %s215 = sld [smem:[#allocation2 + %s214]]
        %v216 = vstv %s215
        %v217 = vmul.f32 %v213, %v216
        %v218 = vld [vmem:[%s195] sm:$0x7]
        %s219 = sadd.s32 %s189, 4
        %s220 = sld [smem:[#allocation2 + %s219]]
        %v221 = vstv %s220
        %v222 = vmul.f32 %v218, %v221
        %v223 = vadd.f32 %v217, %v222
        %v224 = vld [vmem:[%s202] sm:$0x7]
        %s225 = sadd.s32 %s189, 5
        %s226 = sld [smem:[#allocation2 + %s225]]
        %v227 = vstv %s226
        %v228 = vmul.f32 %v224, %v227
        %v229 = vadd.f32 %v223, %v228
        %s230 = sadd.s32 %s189, 10
        %s231 = sld [smem:[#allocation2 + %s230]]
        %v232 = vstv %s231
        %v233 = vadd.f32 %v229, %v232
        %s234 = scalar_lea.vmem %s188, 4
        %235 = vst [vmem:[%s234] sm:$0x7] %v233
        %v236 = vld [vmem:[%s180] sm:$0x7]
        %s237 = sadd.s32 %s189, 6
        %s238 = sld [smem:[#allocation2 + %s237]]
        %v239 = vstv %s238
        %v240 = vmul.f32 %v236, %v239
        %v241 = vld [vmem:[%s195] sm:$0x7]
        %s242 = sadd.s32 %s189, 7
        %s243 = sld [smem:[#allocation2 + %s242]]
        %v244 = vstv %s243
        %v245 = vmul.f32 %v241, %v244
        %v246 = vadd.f32 %v240, %v245
        %v247 = vld [vmem:[%s202] sm:$0x7]
        %s248 = sadd.s32 %s189, 8
        %s249 = sld [smem:[#allocation2 + %s248]]
        %v250 = vstv %s249
        %v251 = vmul.f32 %v247, %v250
        %v252 = vadd.f32 %v246, %v251
        %s253 = sadd.s32 %s189, 11
        %s254 = sld [smem:[#allocation2 + %s253]]
        %v255 = vstv %s254
        %v256 = vadd.f32 %v252, %v255
        %s257 = scalar_lea.vmem %s188, 8
        %258 = vst [vmem:[%s257] sm:$0x7] %v256
        %p259 = scmp.lt.s32.totalorder %s18, 1
        %s260 = scalar_select %p259, %s18, 1
        %p261 = scmp.lt.s32.totalorder %s19, 0
        %s262 = scalar_select %p261, %s19, 0
        %s263 = smul.addr %s260, 3
        %s264 = sadd.s32 %s262, %s263
        %s265 = smul.addr %s264, 4
        %s266 = scalar_lea.vmem %s2, %s265
        // Predicated region
        $region33: #{homogeneous_transform_dims_major.1} parent=27 // pred_check
          %p267 = pneg %p95
        $region34: #{homogeneous_transform_dims_major.1} parent=27 // pred_check_branch
          %269 = sbr.rel (%p267) target = $region36
        $region35: #{homogeneous_transform_dims_major.1} parent=27 // pred_region
          _
        $region36: #{homogeneous_transform_dims_major.1} parent=27 // pred_fallthru
          _
      $region28: #{homogeneous_transform_dims_major.1} parent=5 // pred_fallthru
        _
      %p270 = scmp.le.s32.totalorder 2, %s9
      // Predicated region
      $region37: #{homogeneous_transform_dims_major.1} parent=5 // pred_check
        %p271 = pneg %p270
      $region38: #{homogeneous_transform_dims_major.1} parent=5 // pred_check_branch
        %273 = sbr.rel (%p271) target = $region40
      $region39: #{homogeneous_transform_dims_major.1} parent=5 // pred_region
        %s274 = ssub.s32 %s9, 2
        // Predicated region
        $region41: #{homogeneous_transform_dims_major.1} parent=39 // pred_check
          %p275 = pneg %p101
        $region42: #{homogeneous_transform_dims_major.1} parent=39 // pred_check_branch
          %277 = sbr.rel (%p275) target = $region44
        $region43: #{homogeneous_transform_dims_major.1} parent=39 // pred_region
          %p278 = scmp.lt.s32.totalorder %s20, 1
          %s279 = scalar_select %p278, %s20, 1
          %p280 = scmp.lt.s32.totalorder %s21, 0
          %s281 = scalar_select %p280, %s21, 0
          %s282 = smul.addr %s279, 3
          %s283 = sadd.s32 %s281, %s282
          %s284 = smul.addr %s283, 4
          %s285 = scalar_lea.vmem %s2, %s284
        $region44: #{homogeneous_transform_dims_major.1} parent=39 // pred_fallthru
          _
      $region40: #{homogeneous_transform_dims_major.1} parent=5 // pred_fallthru
        _
    $region6: #{homogeneous_transform_dims_major.1} parent=1 // loop_footer
      %s13 = sadd.s32 1, %s9
    $region7: #{homogeneous_transform_dims_major.1} parent=1 // loop_footer_branch
      %8 = sbr.rel target = $region3
    $region8: #{homogeneous_transform_dims_major.1} parent=1 // loop_exit
      _
    %286 = vsyncpa [#allocation3], 1
    %s287 = scalar_lea.sflag [#allocation3], 1
    %288 = vsyncpa %s287, 1

</llo_original>
